<compile_context>
chip_gen: v7x
topology: tpu7x:2x2x1
jax: 0.10.0
libtpu: 0.0.40
codegen_flags: <defaults>
</compile_context>

<pallas_src>
import jax
import jax.numpy as jnp
from jax.experimental import pallas as pl
from jax.experimental.pallas import tpu as pltpu

LANE = 128
_VMEM_LIMIT = 32 * 1024 * 1024  # safe on v5e/v6e (128 MiB) and v7x (64 MiB)


def _round_up(n, m):
    return ((n + m - 1) // m) * m


def _pick_block_rows(L, block_rows):
    """Cap block_rows at the (8-aligned) number of 128-lane rows in L."""
    block_rows = max(8, (block_rows // 8) * 8)
    rows_needed = _round_up((L + LANE - 1) // LANE, 8)
    return min(block_rows, rows_needed)


def _to_blocks(x, block_rows):
    """(B, L) -> (B, rows, 128) zero-padded so rows % block_rows == 0."""
    B, L = x.shape
    rows = _round_up((L + LANE - 1) // LANE, block_rows)
    Lp = rows * LANE
    if Lp != L:
        x = jnp.pad(x, ((0, 0), (0, Lp - L)))
    return x.reshape(B, rows, LANE)


# -----------------------------------------------------------------------------
# Kernel 1: noisy_audios = alpha_cur * audios + delta * z   (elementwise)
#   scales (SMEM, scalar prefetch): (2, B)  row 0 = alpha_cur, row 1 = delta
#   a_ref/z_ref/out_ref: (1, block_rows, 128) lane/sublane-dense blocks
# -----------------------------------------------------------------------------
def _noisy_kernel(scales_ref, a_ref, z_ref, out_ref):
    b = pl.program_id(0)
    alpha_b = scales_ref[0, b]
    delta_b = scales_ref[1, b]
    out_ref[...] = alpha_b * a_ref[...] + delta_b * z_ref[...]


def noisy_audios_pallas(audios, z, alpha_cur, delta, *, block_rows=1024):
    # audios, z: (B, L) f32; alpha_cur, delta: (B,) f32
    B, L = audios.shape
    block_rows = _pick_block_rows(L, block_rows)
    a3 = _to_blocks(audios, block_rows)
    z3 = _to_blocks(z, block_rows)
    _, R, _ = a3.shape
    scales = jnp.stack([alpha_cur, delta], axis=0).astype(jnp.float32)  # (2, B)

    blk = pl.BlockSpec((1, block_rows, LANE), lambda b, l, *_: (b, l, 0))
    out3 = pl.pallas_call(
        _noisy_kernel,
        out_shape=jax.ShapeDtypeStruct((B, R, LANE), jnp.float32),
        grid_spec=pltpu.PrefetchScalarGridSpec(
            num_scalar_prefetch=1,
            grid=(B, R // block_rows),
            in_specs=[blk, blk],
            out_specs=blk,
        ),
        compiler_params=pltpu.CompilerParams(
            dimension_semantics=("parallel", "parallel"),
            vmem_limit_bytes=_VMEM_LIMIT),
    )(scales, a3, z3)
    return out3.reshape(B, R * LANE)[:, :L]


# -----------------------------------------------------------------------------
# Kernel 2: phi step loss, reduced over the audio length L
#   Hoisted per-batch constants (SMEM, scalar prefetch), params (3, B):
#     row 0: ratio = b_hat / delta^2
#     row 1: coef  = delta^2 / (2 (delta^2 - b_hat))
#     row 2: const = L * ( log(1e-8 + delta^2/(b_hat+1e-8))/4 + (ratio-1)/2 )
#   Per-step body (VPU only): acc += (z - ratio * e)^2   over (block_rows,128)
#   Epilogue (once per batch): loss_b = coef * sum(acc) + const
#   Zero-padded tail rows have z = e = 0 => contribute 0 to the sum.
# -----------------------------------------------------------------------------
def _step_loss_kernel(params_ref, z_ref, e_ref, out_ref, acc_ref):
    b = pl.program_id(0)
    l = pl.program_id(1)

    @pl.when(l == 0)
    def _():
        acc_ref[...] = jnp.zeros_like(acc_ref)

    ratio = params_ref[0, b]
    resid = z_ref[0] - ratio * e_ref[0]          # (block_rows, 128)
    acc_ref[...] += resid * resid                # wide accumulate (VPU)

    @pl.when(l == pl.num_programs(1) - 1)
    def _():
        ssq = jnp.sum(acc_ref[...])              # single cross-lane reduce
        loss_b = params_ref[1, b] * ssq + params_ref[2, b]
        out_ref[...] = jnp.full(out_ref.shape, loss_b, dtype=out_ref.dtype)


def step_loss_pallas(z, e, delta2, b_hat, *, block_rows=1024):
    # z, e: (B, L) f32; delta2, b_hat: (B,) f32
    B, L = z.shape
    block_rows = _pick_block_rows(L, block_rows)
    z3 = _to_blocks(z, block_rows)
    e3 = _to_blocks(e, block_rows)
    _, R, _ = z3.shape

    # Per-batch scalar math hoisted out of the reduction loop.
    ratio = b_hat / delta2
    coef = delta2 / (2.0 * (delta2 - b_hat))
    const = (jnp.log(1e-8 + delta2 / (b_hat + 1e-8)) / 4.0
             + (ratio - 1.0) / 2.0) * float(L)
    params = jnp.stack([ratio, coef, const], axis=0).astype(jnp.float32)  # (3,B)

    data_blk = pl.BlockSpec((1, block_rows, LANE), lambda b, l, *_: (b, l, 0))
    out = pl.pallas_call(
        _step_loss_kernel,
        # (B, 8, 128) output keeps the store lane/sublane aligned; only
        # [:, 0, 0] is meaningful.
        out_shape=jax.ShapeDtypeStruct((B, 8, LANE), jnp.float32),
        grid_spec=pltpu.PrefetchScalarGridSpec(
            num_scalar_prefetch=1,
            grid=(B, R // block_rows),
            in_specs=[data_blk, data_blk],
            out_specs=pl.BlockSpec((1, 8, LANE), lambda b, l, *_: (b, 0, 0)),
            scratch_shapes=[pltpu.VMEM((block_rows, LANE), jnp.float32)],
        ),
        compiler_params=pltpu.CompilerParams(
            dimension_semantics=("parallel", "arbitrary"),
            vmem_limit_bytes=_VMEM_LIMIT),
    )(params, z3, e3)
    return out[:, 0, 0]  # (B,)


# -----------------------------------------------------------------------------
# Deterministic stand-ins for the external networks passed to StepLoss.forward.
# TODO(synk): the real score/schedule networks are external modules passed into
#             StepLoss.forward; here they are deterministic JAX stubs.
# -----------------------------------------------------------------------------
def stub_score_net(noisy, mels, ts, num_steps):
    # noisy: (B, L), mels: (B, F, M), ts: (B, 1)  ->  e: (B, L)
    mel_ctx = jnp.mean(mels, axis=(1, 2))[:, None]                    # (B, 1)
    t_emb = ts.astype(jnp.float32) / float(num_steps)                 # (B, 1)
    return jnp.tanh(0.5 * noisy + 0.1 * mel_ctx + 0.1 * t_emb)


def stub_schedule_net(noisy, beta_bounds):
    # noisy: (B, L); beta_bounds = (b_nxt (B,1), delta^2 (B,1)) -> b_hat (B,1)
    b_nxt, delta2 = beta_bounds
    raw = jnp.mean(noisy * noisy, axis=-1, keepdims=True)             # (B, 1)
    # keep 0 < b_hat < delta^2 so the loss denominator stays positive
    return 0.9 * jnp.minimum(b_nxt, delta2) * jax.nn.sigmoid(raw)


# -----------------------------------------------------------------------------
# StepLoss.forward equivalent
# -----------------------------------------------------------------------------
def step_loss_forward(key, alpha, tau, num_steps, mels, audios_b1l,
                      *, block_rows=1024):
    B = audios_b1l.shape[0]
    L = audios_b1l.shape[-1]
    audios = audios_b1l[:, 0, :]                                       # (B, L)

    k_ts, k_z = jax.random.split(key)
    # torch.randint(tau, T - tau) -> jax.random.randint (RNG kept outside the
    # kernel for determinism / reproducibility)
    ts = jax.random.randint(k_ts, (B,), tau, num_steps - tau)
    alpha_cur = alpha[ts]                                              # (B,)
    alpha_nxt = alpha[ts + tau]                                        # (B,)
    b_nxt = 1.0 - (alpha_nxt / alpha_cur) ** 2.0                       # (B,)
    delta = jnp.sqrt(1.0 - alpha_cur ** 2.0)                           # (B,)
    delta2 = delta ** 2.0                                              # (B,)

    z = jax.random.normal(k_z, (B, L), dtype=jnp.float32)              # (B, L)

    # hot path 1 (Pallas): noisy = alpha_cur * audios + delta * z
    noisy = noisy_audios_pallas(audios, z, alpha_cur, delta,
                                block_rows=block_rows)                 # (B, L)

    # external networks (stubbed, plain JAX glue)
    e = stub_score_net(noisy, mels, ts[:, None], num_steps)            # (B, L)
    b_hat = stub_schedule_net(noisy,
                              (b_nxt[:, None], delta2[:, None]))[:, 0]  # (B,)

    # hot path 2 (Pallas): phi-loss residual math + reduction over L
    loss = step_loss_pallas(z, e, delta2, b_hat, block_rows=block_rows)  # (B,)
    return loss, (z, e, delta2, b_hat)


def reference_loss(z, e, delta2, b_hat):
    L = z.shape[-1]
    d2 = delta2[:, None]
    bh = b_hat[:, None]
    coef = d2 / (2.0 * (d2 - bh))
    phi = coef * (z - bh / d2 * e) ** 2 + jnp.log(1e-8 + d2 / (bh + 1e-8)) / 4.0
    return phi.sum(-1) + (b_hat / delta2 - 1.0) / 2.0 * L


if __name__ == "__main__":
    # Diffusion parameters implied by __init__: alpha (T,), tau, T.
    T, tau = 32, 2
    betas = jnp.linspace(1e-4, 5e-2, T, dtype=jnp.float32)
    alpha = jnp.sqrt(jnp.cumprod(1.0 - betas))                         # (T,)

    # Small example inputs consistent with the forward signature.
    # L deliberately NOT a multiple of 128 to exercise the padding path;
    # block_rows=64 gives several reduction steps per batch element.
    B, L, FRAMES, NMEL = 2, 24000, 8, 16
    key = jax.random.PRNGKey(0)
    k_mel, k_aud, k_fwd = jax.random.split(key, 3)
    mels = jax.random.normal(k_mel, (B, FRAMES, NMEL), dtype=jnp.float32)
    audios = jax.random.normal(k_aud, (B, 1, L), dtype=jnp.float32)

    loss, (z, e, d2, bh) = step_loss_forward(k_fwd, alpha, tau, T, mels, audios,
                                             block_rows=64)
    loss = jax.block_until_ready(loss)

    ref = reference_loss(z, e, d2, bh)
    assert loss.shape == (B,)
    assert jnp.allclose(loss, ref, rtol=2e-3, atol=1e-2), (loss, ref)

    print("KERNEL_OK")
</pallas_src>

<mosaic_0001>
module attributes {stable_mosaic.version = 11 : i64} {
  func.func @_noisy_kernel(%arg0: i32, %arg1: i32, %arg2: memref<2x2xf32, #tpu.memory_space<smem>>, %arg3: memref<1x64x128xf32, #tpu.memory_space<vmem>>, %arg4: memref<1x64x128xf32, #tpu.memory_space<vmem>>, %arg5: memref<1x64x128xf32, #tpu.memory_space<vmem>>) attributes {dimension_semantics = [#tpu.dimension_semantics<parallel>, #tpu.dimension_semantics<parallel>], iteration_bounds = array<i64: 2, 3>, scalar_prefetch = 1 : i64, scratch_operands = 0 : i64, tpu.core_type = #tpu.core_type<tc>, window_params = [{transform_indices = @transform_0, window_bounds = array<i64: 1, 64, 128>}, {transform_indices = @transform_1, window_bounds = array<i64: 1, 64, 128>}, {transform_indices = @transform_2, window_bounds = array<i64: 1, 64, 128>}]} {
    %c0 = arith.constant 0 : index
    %0 = arith.index_cast %arg0 : i32 to index
    %1 = memref.load %arg2[%c0, %0] : memref<2x2xf32, #tpu.memory_space<smem>>
    %c1 = arith.constant 1 : index
    %2 = arith.index_cast %arg0 : i32 to index
    %3 = memref.load %arg2[%c1, %2] : memref<2x2xf32, #tpu.memory_space<smem>>
    %c0_0 = arith.constant 0 : index
    %c0_1 = arith.constant 0 : index
    %c0_2 = arith.constant 0 : index
    %4 = vector.load %arg3[%c0_0, %c0_1, %c0_2] : memref<1x64x128xf32, #tpu.memory_space<vmem>>, vector<1x64x128xf32>
    %5 = vector.broadcast %1 : f32 to vector<1x64x128xf32>
    %6 = arith.mulf %5, %4 : vector<1x64x128xf32>
    %c0_3 = arith.constant 0 : index
    %c0_4 = arith.constant 0 : index
    %c0_5 = arith.constant 0 : index
    %7 = vector.load %arg4[%c0_3, %c0_4, %c0_5] : memref<1x64x128xf32, #tpu.memory_space<vmem>>, vector<1x64x128xf32>
    %8 = vector.broadcast %3 : f32 to vector<1x64x128xf32>
    %9 = arith.mulf %8, %7 : vector<1x64x128xf32>
    %10 = arith.addf %6, %9 : vector<1x64x128xf32>
    %c0_6 = arith.constant 0 : index
    %c0_7 = arith.constant 0 : index
    %c0_8 = arith.constant 0 : index
    %11 = vector.load %arg5[%c0_6, %c0_7, %c0_8] : memref<1x64x128xf32, #tpu.memory_space<vmem>>, vector<1x64x128xf32>
    tpu.vector_store %arg5[%c0_6, %c0_7, %c0_8], %10 {strides = array<i32>} : memref<1x64x128xf32, #tpu.memory_space<vmem>>, vector<1x64x128xf32>,
    return
  }
  func.func @transform_0(%arg0: i32, %arg1: i32, %arg2: memref<2x2xf32, #tpu.memory_space<smem>>) -> (i32, i32, i32) {
    %c0_i32 = arith.constant 0 : i32
    %c0_i32_0 = arith.constant 0 : i32
    return %arg0, %arg1, %c0_i32 : i32, i32, i32
  }
  func.func @transform_1(%arg0: i32, %arg1: i32, %arg2: memref<2x2xf32, #tpu.memory_space<smem>>) -> (i32, i32, i32) {
    %c0_i32 = arith.constant 0 : i32
    %c0_i32_0 = arith.constant 0 : i32
    return %arg0, %arg1, %c0_i32 : i32, i32, i32
  }
  func.func @transform_2(%arg0: i32, %arg1: i32, %arg2: memref<2x2xf32, #tpu.memory_space<smem>>) -> (i32, i32, i32) {
    %c0_i32 = arith.constant 0 : i32
    %c0_i32_0 = arith.constant 0 : i32
    return %arg0, %arg1, %c0_i32 : i32, i32, i32
  }
}

</mosaic_0001>

<llo_original>
// kernel: tpu_custom_call.1
$region0: #{tpu_custom_call.1}
  #allocation0 [shape = 'u32[]', space=smem, size = 0x4, offset = 0x4, fixed_abs, tag = 'smem constant byte address 0x4 - core index']
  #allocation1 [shape = 'u32[144,128]{1,0:T(1,128)}', space=vmem, size = 0x12000, scoped, tag = 'internal scratch']
  #allocation2 [shape = 's32[1]{0}', space=sflag, size = 0x4, scoped, tag = 'scoped memory for tpu_custom_call.1']
  #allocation3 [shape = 'u8[1024]{0}', space=smem, size = 0x400, scoped, tag = 'prefetched SMEM operand 0']
  %s0 = inlined_call_operand.hbm [shape: f32[2,2], index: 0, kind: input, shape index: {}]
  %s1 = inlined_call_operand.hbm [shape: f32[2,192,128], index: 1, kind: input, shape index: {}]
  %s2 = inlined_call_operand.hbm [shape: f32[2,192,128], index: 2, kind: input, shape index: {}]
  %s3 = inlined_call_operand.hbm [shape: f32[2,192,128], index: 3, kind: output, shape index: {}]
  %s4 = sld [smem:[#allocation0]]
  $region49: #{tpu_custom_call.1} parent=0
    _
  %s6 = ssub.s32 1, %s4
  %s7 = scalar_select 0, %s6, %s4
  %9 = dma.hbm_to_smem %s0, 32, [#allocation3], [#allocation2]
  %10 = dma.done [#allocation2], 32
  %11 = sfence
  $region1: #{tpu_custom_call.1} parent=0
    #allocation4 [shape = 'u8[65536]{0}', space=vmem, size = 0x10000, scoped, tag = 'input window, operand 1']
    #allocation5 [shape = 's32[2]{0}', space=sflag, size = 0x8, scoped, tag = 'scoped memory for tpu_custom_call.1']
    #allocation6 [shape = 's32[2]{0}', space=sflag, size = 0x8, scoped, tag = 'scoped memory for tpu_custom_call.1']
    #allocation7 [shape = 'u8[65536]{0}', space=vmem, size = 0x10000, scoped, tag = 'input window, operand 2']
    #allocation8 [shape = 's32[2]{0}', space=sflag, size = 0x8, scoped, tag = 'scoped memory for tpu_custom_call.1']
    #allocation9 [shape = 'u8[65536]{0}', space=vmem, size = 0x10000, scoped, tag = 'output window, operand 0']
    %12 = vsyncpa [#allocation5], 0
    %s13 = scalar_lea.sflag [#allocation5], 1
    %14 = vsyncpa %s13, 0
    %15 = vsyncpa [#allocation8], 0
    %s16 = scalar_lea.sflag [#allocation8], 1
    %17 = vsyncpa %s16, 0
    %18 = vsyncpa [#allocation6], 0
    %s19 = scalar_lea.sflag [#allocation6], 1
    %20 = vsyncpa %s19, 0
    loop: start=0, step=1, limit=8
    $region2: #{tpu_custom_call.1} parent=1 // loop_pre_header
      _
    $region3: #{tpu_custom_call.1} parent=1 // loop_header
      %s22 = sphi 0, %s26
      %p23 = scmp.ge.s32.totalorder %s22, 8
      %s29 = sphi 0, %s41
      %s30 = sphi 0, %s37
      %s31 = sphi 0, %s29
      %s32 = sphi 0, %s30
      %s33 = sphi 0, %s31
      %s34 = sphi 0, %s32
      %s46 = sphi 0, %s48
      %s49 = sphi 0, %s46
      %s50 = sphi 0, %s49
      %s66 = sphi 0, %s50
      %s74 = sphi 0, %s76
      %s77 = sphi 0, %s74
      %s78 = sphi 0, %s77
      %s94 = sphi 0, %s78
      %s102 = sphi 0, %s104
      %s105 = sphi 0, %s102
      %s106 = sphi 0, %s105
      %s122 = sphi 0, %s106
    $region4: #{tpu_custom_call.1} parent=1 // loop_header_branch
      %25 = sbr.rel (%p23) target = $region8
    $region5: #{tpu_custom_call.1} parent=1 // loop_body
      %s27 = ssub.s32 %s22, 1
      %s28 = ssub.s32 %s22, 2
      %s35 = sadd.s32 1, %s30
      %p36 = scmp.ge.s32.totalorder %s35, 3
      %s37 = scalar_select %p36, 0, %s35
      %s38 = sadd.s32 1, %s29
      %s39 = scalar_select %p36, %s38, %s29
      %p40 = scmp.ge.s32.totalorder %s39, 2
      %s41 = scalar_select %p40, 0, %s39
      %s42 = ssub.s32 %s29, %s41
      %s43 = ssub.s32 %s30, %s37
      %s44 = sor.u32 %s42, %s43
      %p45 = scmp.eq.s32.totalorder %s44, 0
      %s47 = sadd.s32 %s46, 1
      %s48 = scalar_select %p45, %s46, %s47
      %p51 = pneg %p45
      %p52 = scmp.eq.s32.totalorder %s22, 5
      %p53 = por %p51, %p52
      %p54 = scmp.ne.s32.totalorder %s46, %s49
      %p55 = scmp.eq.s32.totalorder %s22, 0
      %p56 = por %p54, %p55
      %p57 = scmp.ne.s32.totalorder %s46, %s49
      %p58 = scmp.eq.s32.totalorder %s27, 5
      %p59 = por %p57, %p58
      %p60 = scmp.ne.s32.totalorder %s49, %s50
      %p61 = scmp.eq.s32.totalorder %s27, 0
      %p62 = por %p60, %p61
      %p63 = scmp.ne.s32.totalorder %s49, %s50
      %p64 = scmp.eq.s32.totalorder %s28, 5
      %p65 = por %p63, %p64
      %p67 = scmp.ne.s32.totalorder %s50, %s66
      %p68 = scmp.eq.s32.totalorder %s28, 0
      %p69 = por %p67, %p68
      %s70 = ssub.s32 %s29, %s41
      %s71 = ssub.s32 %s30, %s37
      %s72 = sor.u32 %s70, %s71
      %p73 = scmp.eq.s32.totalorder %s72, 0
      %s75 = sadd.s32 %s74, 1
      %s76 = scalar_select %p73, %s74, %s75
      %p79 = pneg %p73
      %p80 = scmp.eq.s32.totalorder %s22, 5
      %p81 = por %p79, %p80
      %p82 = scmp.ne.s32.totalorder %s74, %s77
      %p83 = scmp.eq.s32.totalorder %s22, 0
      %p84 = por %p82, %p83
      %p85 = scmp.ne.s32.totalorder %s74, %s77
      %p86 = scmp.eq.s32.totalorder %s27, 5
      %p87 = por %p85, %p86
      %p88 = scmp.ne.s32.totalorder %s77, %s78
      %p89 = scmp.eq.s32.totalorder %s27, 0
      %p90 = por %p88, %p89
      %p91 = scmp.ne.s32.totalorder %s77, %s78
      %p92 = scmp.eq.s32.totalorder %s28, 5
      %p93 = por %p91, %p92
      %p95 = scmp.ne.s32.totalorder %s78, %s94
      %p96 = scmp.eq.s32.totalorder %s28, 0
      %p97 = por %p95, %p96
      %s98 = ssub.s32 %s29, %s41
      %s99 = ssub.s32 %s30, %s37
      %s100 = sor.u32 %s98, %s99
      %p101 = scmp.eq.s32.totalorder %s100, 0
      %s103 = sadd.s32 %s102, 1
      %s104 = scalar_select %p101, %s102, %s103
      %p107 = pneg %p101
      %p108 = scmp.eq.s32.totalorder %s22, 5
      %p109 = por %p107, %p108
      %p110 = scmp.ne.s32.totalorder %s102, %s105
      %p111 = scmp.eq.s32.totalorder %s22, 0
      %p112 = por %p110, %p111
      %p113 = scmp.ne.s32.totalorder %s102, %s105
      %p114 = scmp.eq.s32.totalorder %s27, 5
      %p115 = por %p113, %p114
      %p116 = scmp.ne.s32.totalorder %s105, %s106
      %p117 = scmp.eq.s32.totalorder %s27, 0
      %p118 = por %p116, %p117
      %p119 = scmp.ne.s32.totalorder %s105, %s106
      %p120 = scmp.eq.s32.totalorder %s28, 5
      %p121 = por %p119, %p120
      %p123 = scmp.ne.s32.totalorder %s106, %s122
      %p124 = scmp.eq.s32.totalorder %s28, 0
      %p125 = por %p123, %p124
      %p126 = scmp.le.s32.totalorder 1, %s22
      %p127 = scmp.lt.s32.totalorder %s22, 7
      %p128 = pnand %p126, %p127
      %p129 = pneg %p128
      // Predicated region
      $region9: #{tpu_custom_call.1} parent=5 // pred_check
        _
      $region10: #{tpu_custom_call.1} parent=5 // pred_check_branch
        %131 = sbr.rel (%p128) target = $region12
      $region11: #{tpu_custom_call.1} parent=5 // pred_region
        %s132 = ssub.s32 %s22, 1
      $region12: #{tpu_custom_call.1} parent=5 // pred_fallthru
        _
      %p133 = scmp.lt.s32.totalorder %s22, 6
      // Predicated region
      $region13: #{tpu_custom_call.1} parent=5 // pred_check
        %p134 = pneg %p133
      $region14: #{tpu_custom_call.1} parent=5 // pred_check_branch
        %136 = sbr.rel (%p134) target = $region16
      $region15: #{tpu_custom_call.1} parent=5 // pred_region
        // Predicated region
        $region17: #{tpu_custom_call.1} parent=15 // pred_check
          %p137 = pneg %p56
        $region18: #{tpu_custom_call.1} parent=15 // pred_check_branch
          %139 = sbr.rel (%p137) target = $region20
        $region19: #{tpu_custom_call.1} parent=15 // pred_region
          %s140 = sand.u32 %s46, 1
          %s141 = scalar_lea.sflag [#allocation5], %s140
          %s142 = sand.u32 %s46, 1
          %s143 = smul.addr %s142, 64
          %s144 = scalar_lea.vmem [#allocation4], %s143
          %s145 = smul.u32 8, %s30
          %s147 = ssub.s32 1024, 1024
          %148 = vsyncadd %s141, %s147
          %s149 = smul.addr %s29, 24
          %s150 = sadd.s32 %s145, %s149
          %s151 = smul.addr %s150, 128
          %s152 = scalar_lea.hbm %s1, %s151
          %s153 = sshll.u32 %s144, 4
          %s154 = int_to_ptr.vmem [resolvable:$true] %s153
          %159 = dma.hbm_to_vmem [thread:$0]  %s152, 1024, %s154, %s141, 128, 128, 8
        $region20: #{tpu_custom_call.1} parent=15 // pred_fallthru
          _
        // Predicated region
        $region21: #{tpu_custom_call.1} parent=15 // pred_check
          %p160 = pneg %p84
        $region22: #{tpu_custom_call.1} parent=15 // pred_check_branch
          %162 = sbr.rel (%p160) target = $region24
        $region23: #{tpu_custom_call.1} parent=15 // pred_region
          %s163 = sand.u32 %s74, 1
          %s164 = scalar_lea.sflag [#allocation8], %s163
          %s165 = sand.u32 %s74, 1
          %s166 = smul.addr %s165, 64
          %s167 = scalar_lea.vmem [#allocation7], %s166
          %s168 = smul.u32 8, %s30
          %s170 = ssub.s32 1024, 1024
          %171 = vsyncadd %s164, %s170
          %s172 = smul.addr %s29, 24
          %s173 = sadd.s32 %s168, %s172
          %s174 = smul.addr %s173, 128
          %s175 = scalar_lea.hbm %s2, %s174
          %s176 = sshll.u32 %s167, 4
          %s177 = int_to_ptr.vmem [resolvable:$true] %s176
          %182 = dma.hbm_to_vmem [thread:$0]  %s175, 1024, %s177, %s164, 128, 128, 8
        $region24: #{tpu_custom_call.1} parent=15 // pred_fallthru
          _
      $region16: #{tpu_custom_call.1} parent=5 // pred_fallthru
        _
      %p183 = scmp.le.s32.totalorder 1, %s22
      %p184 = scmp.lt.s32.totalorder %s22, 7
      %p185 = pnand %p183, %p184
      %p186 = pneg %p185
      // Predicated region
      $region25: #{tpu_custom_call.1} parent=5 // pred_check
        _
      $region26: #{tpu_custom_call.1} parent=5 // pred_check_branch
        %188 = sbr.rel (%p185) target = $region28
      $region27: #{tpu_custom_call.1} parent=5 // pred_region
        %s189 = ssub.s32 %s22, 1
        %s190 = sand.u32 %s49, 1
        %s191 = scalar_lea.sflag [#allocation5], %s190
        %s192 = sand.u32 %s49, 1
        %s193 = smul.addr %s192, 64
        %s194 = scalar_lea.vmem [#allocation4], %s193
        // Predicated region
        $region29: #{tpu_custom_call.1} parent=27 // pred_check
          %p195 = pneg %p62
        $region30: #{tpu_custom_call.1} parent=27 // pred_check_branch
          %197 = sbr.rel (%p195) target = $region32
        $region31: #{tpu_custom_call.1} parent=27 // pred_region
          %198 = dma.done %s191, 1024
        $region32: #{tpu_custom_call.1} parent=27 // pred_fallthru
          _
        %s199 = sand.u32 %s77, 1
        %s200 = scalar_lea.sflag [#allocation8], %s199
        %s201 = sand.u32 %s77, 1
        %s202 = smul.addr %s201, 64
        %s203 = scalar_lea.vmem [#allocation7], %s202
        // Predicated region
        $region33: #{tpu_custom_call.1} parent=27 // pred_check
          %p204 = pneg %p90
        $region34: #{tpu_custom_call.1} parent=27 // pred_check_branch
          %206 = sbr.rel (%p204) target = $region36
        $region35: #{tpu_custom_call.1} parent=27 // pred_region
          %207 = dma.done %s200, 1024
        $region36: #{tpu_custom_call.1} parent=27 // pred_fallthru
          _
        %s208 = sand.u32 %s49, 1
        %s209 = scalar_lea.sflag [#allocation5], %s208
        %s210 = sand.u32 %s49, 1
        %s211 = smul.addr %s210, 64
        %s212 = scalar_lea.vmem [#allocation4], %s211
        %p213 = pneg %p62
        %p214 = pneg %p59
        %s215 = sand.u32 %s77, 1
        %s216 = scalar_lea.sflag [#allocation8], %s215
        %s217 = sand.u32 %s77, 1
        %s218 = smul.addr %s217, 64
        %s219 = scalar_lea.vmem [#allocation7], %s218
        %p220 = pneg %p90
        %p221 = pneg %p87
        %p222 = pneg %p118
        %p223 = pneg %p115
        %s224 = sand.u32 %s105, 1
        %s225 = scalar_lea.sflag [#allocation6], %s224
        %s226 = sand.u32 %s105, 1
        %s227 = smul.addr %s226, 64
        %s228 = scalar_lea.vmem [#allocation9], %s227
        %s229 = smul.u32 8, %s32
        %s230 = smul.u32 8, %s32
        %s231 = smul.u32 8, %s32
        %s232 = sld [smem:[#allocation3 + %s31]]
        %s233 = sshra.s32 %s31, 7
        %s234 = sand.u32 %s31, 127
        %s235 = sadd.s32 %s233, 1
        %s236 = smul.u32 %s235, 128
        %s237 = sshra.s32 %s31, 7
        %s238 = sand.u32 %s31, 127
        %s239 = sadd.s32 %s236, %s238
        %s240 = sld [smem:[#allocation3 + %s239]]
        %v241 = vld [vmem:[%s194] sm:$0xff]
        %v242 = vld [vmem:[%s194 + $0x8] sm:$0xff]
        %v243 = vld [vmem:[%s194 + $0x10] sm:$0xff]
        %v244 = vld [vmem:[%s194 + $0x18] sm:$0xff]
        %v245 = vld [vmem:[%s194 + $0x20] sm:$0xff]
        %v246 = vld [vmem:[%s194 + $0x28] sm:$0xff]
        %v247 = vld [vmem:[%s194 + $0x30] sm:$0xff]
        %v248 = vld [vmem:[%s194 + $0x38] sm:$0xff]
        %v249 = vstv %s232
        %v250 = vmul.f32 %v249, %v241
        %v251 = vmul.f32 %v249, %v242
        %v252 = vmul.f32 %v249, %v243
        %v253 = vmul.f32 %v249, %v244
        %v254 = vmul.f32 %v249, %v245
        %v255 = vmul.f32 %v249, %v246
        %v256 = vmul.f32 %v249, %v247
        %v257 = vmul.f32 %v249, %v248
        %v258 = vld [vmem:[%s203] sm:$0xff]
        %v259 = vld [vmem:[%s203 + $0x8] sm:$0xff]
        %v260 = vld [vmem:[%s203 + $0x10] sm:$0xff]
        %v261 = vld [vmem:[%s203 + $0x18] sm:$0xff]
        %v262 = vld [vmem:[%s203 + $0x20] sm:$0xff]
        %v263 = vld [vmem:[%s203 + $0x28] sm:$0xff]
        %v264 = vld [vmem:[%s203 + $0x30] sm:$0xff]
        %v265 = vld [vmem:[%s203 + $0x38] sm:$0xff]
        %v266 = vstv %s240
        %v267 = vmul.f32 %v266, %v258
        %v268 = vmul.f32 %v266, %v259
        %v269 = vmul.f32 %v266, %v260
        %v270 = vmul.f32 %v266, %v261
        %v271 = vmul.f32 %v266, %v262
        %v272 = vmul.f32 %v266, %v263
        %v273 = vmul.f32 %v266, %v264
        %v274 = vmul.f32 %v266, %v265
        %v275 = vadd.f32 %v250, %v267
        %v276 = vadd.f32 %v251, %v268
        %v277 = vadd.f32 %v252, %v269
        %v278 = vadd.f32 %v253, %v270
        %v279 = vadd.f32 %v254, %v271
        %v280 = vadd.f32 %v255, %v272
        %v281 = vadd.f32 %v256, %v273
        %v282 = vadd.f32 %v257, %v274
        %283 = vst [vmem:[%s228] sm:$0xff] %v275
        %284 = vst [vmem:[%s228 + $0x8] sm:$0xff] %v276
        %285 = vst [vmem:[%s228 + $0x10] sm:$0xff] %v277
        %286 = vst [vmem:[%s228 + $0x18] sm:$0xff] %v278
        %287 = vst [vmem:[%s228 + $0x20] sm:$0xff] %v279
        %288 = vst [vmem:[%s228 + $0x28] sm:$0xff] %v280
        %289 = vst [vmem:[%s228 + $0x30] sm:$0xff] %v281
        %290 = vst [vmem:[%s228 + $0x38] sm:$0xff] %v282
        %s291 = sand.u32 %s105, 1
        %s292 = scalar_lea.sflag [#allocation6], %s291
        %s293 = sand.u32 %s105, 1
        %s294 = smul.addr %s293, 64
        %s295 = scalar_lea.vmem [#allocation9], %s294
        // Predicated region
        $region37: #{tpu_custom_call.1} parent=27 // pred_check
          %p296 = pneg %p115
        $region38: #{tpu_custom_call.1} parent=27 // pred_check_branch
          %298 = sbr.rel (%p296) target = $region40
        $region39: #{tpu_custom_call.1} parent=27 // pred_region
          %s299 = smul.u32 8, %s32
          %s301 = ssub.s32 1024, 1024
          %302 = vsyncadd %s292, %s301
          %s303 = smul.addr %s31, 24
          %s304 = sadd.s32 %s299, %s303
          %s305 = smul.addr %s304, 128
          %s306 = scalar_lea.hbm %s3, %s305
          %s307 = sshll.u32 %s295, 4
          %s308 = int_to_ptr.vmem [resolvable:$true] %s307
          %313 = dma.vmem_to_hbm [thread:$0]  %s308, 1024, %s306, %s292, 128, 128, 8
        $region40: #{tpu_custom_call.1} parent=27 // pred_fallthru
          _
      $region28: #{tpu_custom_call.1} parent=5 // pred_fallthru
        _
      %p314 = scmp.le.s32.totalorder 2, %s22
      // Predicated region
      $region41: #{tpu_custom_call.1} parent=5 // pred_check
        %p315 = pneg %p314
      $region42: #{tpu_custom_call.1} parent=5 // pred_check_branch
        %317 = sbr.rel (%p315) target = $region44
      $region43: #{tpu_custom_call.1} parent=5 // pred_region
        %s318 = ssub.s32 %s22, 2
        // Predicated region
        $region45: #{tpu_custom_call.1} parent=43 // pred_check
          %p319 = pneg %p121
        $region46: #{tpu_custom_call.1} parent=43 // pred_check_branch
          %321 = sbr.rel (%p319) target = $region48
        $region47: #{tpu_custom_call.1} parent=43 // pred_region
          %s322 = sand.u32 %s106, 1
          %s323 = scalar_lea.sflag [#allocation6], %s322
          %s324 = sand.u32 %s106, 1
          %s325 = smul.addr %s324, 64
          %s326 = scalar_lea.vmem [#allocation9], %s325
          %327 = dma.done %s323, 1024
        $region48: #{tpu_custom_call.1} parent=43 // pred_fallthru
          _
      $region44: #{tpu_custom_call.1} parent=5 // pred_fallthru
        _
    $region6: #{tpu_custom_call.1} parent=1 // loop_footer
      %s26 = sadd.s32 1, %s22
    $region7: #{tpu_custom_call.1} parent=1 // loop_footer_branch
      %21 = sbr.rel target = $region3
    $region8: #{tpu_custom_call.1} parent=1 // loop_exit
      _
    %328 = vsyncpa [#allocation5], 1
    %s329 = scalar_lea.sflag [#allocation5], 1
    %330 = vsyncpa %s329, 1
    %331 = vsyncpa [#allocation8], 1
    %s332 = scalar_lea.sflag [#allocation8], 1
    %333 = vsyncpa %s332, 1
    %334 = vsyncpa [#allocation6], 1
    %s335 = scalar_lea.sflag [#allocation6], 1
    %336 = vsyncpa %s335, 1

</llo_original>
